<compile_context>
chip_gen: v5e
topology: v5e:2x2
jax: 0.10.0
libtpu: 0.0.40
codegen_flags: <defaults>
</compile_context>

<pallas_src>
import jax
import jax.numpy as jnp
from jax.experimental import pallas as pl
from jax.experimental.pallas import tpu as pltpu


def _round_up(x, m):
    return ((x + m - 1) // m) * m


def _cdiv(a, b):
    return (a + b - 1) // b


def _device_budgets():
    """Return (per-x-tile byte budget, vmem_limit_bytes or None) per TPU generation."""
    kind = ""
    try:
        kind = jax.devices()[0].device_kind.lower()
    except Exception:
        pass
    if "v5" in kind:
        # v5e: 16 MiB default scoped VMEM; ~2 MiB tiles are already at the BW plateau.
        return 2 << 20, None
    if "v6" in kind:
        # v6e: 128 MiB physical VMEM; big tiles + raised scoped limit.
        return 8 << 20, 96 << 20
    # v7x / unknown: only 64 MiB physical per TC -> stay conservative.
    return 4 << 20, 40 << 20


def _fs_kernel(x_ref, z_ref, o_ref):
    # Gate math in f32 (z_ref is f32 [1, TD]); multiply stays in x's dtype.
    gate = jnp.clip(z_ref[...] + 0.5, 0.0, 1.0)
    o_ref[...] = (x_ref[...] * gate.astype(x_ref.dtype)).astype(o_ref.dtype)


def feature_selector_forward(x, mu, noise=None, *, sigma, training=True, donate_x=False):
    """x: [B, D]; mu: [D]; noise: [D] (required only when training=True)."""
    B, D = x.shape
    out_dtype = x.dtype
    itemsize = jnp.dtype(out_dtype).itemsize
    row_unit = max(8, 32 // itemsize)          # sublane packing: 8 f32, 16 bf16, 32 int8

    budget_bytes, vmem_limit = _device_budgets()
    elems_budget = max(budget_bytes // itemsize, row_unit * 128)

    # ---- feature tile (lane axis): multiple of 128, or the full dim when D <= 128 ----
    if D <= 128:
        TD = D
    else:
        lane_cap = max(128, min(2048, (elems_budget // row_unit) // 128 * 128))
        TD = min(_round_up(D, 128), lane_cap)

    # ---- batch tile (sublane axis): fill the remaining byte budget ----
    if B <= row_unit:
        TB = B
    else:
        tb_cap = max(row_unit, (elems_budget // max(TD, 1)) // row_unit * row_unit)
        TB = min(_round_up(B, row_unit), tb_cap)

    nB = _cdiv(B, TB)
    nD = _cdiv(D, TD)

    # ---- ensure the ("parallel","parallel") grid can be split across 2 TCs (v7x) ----
    if nB * nD == 1:
        if B > row_unit:
            TB = _round_up(_cdiv(B, 2), row_unit)
            nB = _cdiv(B, TB)
        elif D > 128:
            TD = _round_up(_cdiv(TD, 2), 128)
            nD = _cdiv(D, TD)

    # ---- pre-combine gate params in the wrapper (tiny O(D) op, one fewer stream) ----
    z = mu.astype(jnp.float32)
    if training:
        if noise is None:
            raise ValueError("noise is required when training=True")
        z = z + jnp.float32(sigma) * noise.astype(jnp.float32)
    D_gate = nD * TD
    if D_gate != D:
        z = jnp.pad(z, (0, D_gate - D))        # only the tiny [D] vector is padded
    z = z.reshape(1, D_gate)

    # Grid order: feature tiles outer, batch tiles inner -> gate block reused
    # across the (long) batch loop without re-DMA.
    grid = (nD, nB)
    x_spec = pl.BlockSpec((TB, TD), lambda j, i: (i, j))
    z_spec = pl.BlockSpec((1, TD), lambda j, i: (0, j))
    o_spec = pl.BlockSpec((TB, TD), lambda j, i: (i, j))

    cost = pl.CostEstimate(
        flops=4 * B * D,
        transcendentals=0,
        bytes_accessed=2 * B * D * itemsize + D_gate * 4,
    )
    cp_kwargs = dict(dimension_semantics=("parallel", "parallel"))
    if vmem_limit is not None:
        cp_kwargs["vmem_limit_bytes"] = vmem_limit
    cparams = pltpu.CompilerParams(**cp_kwargs)

    return pl.pallas_call(
        _fs_kernel,
        out_shape=jax.ShapeDtypeStruct((B, D), out_dtype),
        grid=grid,
        in_specs=[x_spec, z_spec],
        out_specs=o_spec,
        compiler_params=cparams,
        cost_estimate=cost,
        input_output_aliases={0: 0} if donate_x else {},
    )(x, z)


def feature_selector_ref(x, mu, noise, sigma, training=True):
    z = mu.astype(jnp.float32) + sigma * noise.astype(jnp.float32) * (1.0 if training else 0.0)
    gate = jnp.clip(z + 0.5, 0.0, 1.0)
    return (x.astype(jnp.float32) * gate[None, :]).astype(x.dtype)


if __name__ == "__main__":
    # Small shapes consistent with the module: x is [batch, input_dim].
    batch, input_dim = 8, 32
    sigma = 0.5

    key = jax.random.PRNGKey(0)
    kx, kn = jax.random.split(key, 2)

    x = jax.random.normal(kx, (batch, input_dim), dtype=jnp.float32)
    # __init__: mu = 0.0 * randn(input_dim) == zeros.
    mu = jnp.zeros((input_dim,), dtype=jnp.float32)
    # forward(): noise.normal_() resamples each call; supply a deterministic draw here.
    noise = jax.random.normal(kn, (input_dim,), dtype=jnp.float32)

    # Training mode (gate uses mu + sigma * noise).
    out_train = jax.block_until_ready(
        feature_selector_forward(x, mu, noise, sigma=sigma, training=True))
    ref_train = feature_selector_ref(x, mu, noise, sigma, training=True)
    assert out_train.shape == (batch, input_dim)
    assert jnp.allclose(out_train, ref_train, atol=1e-6, rtol=1e-6)

    # Eval mode (noise term vanishes).
    out_eval = jax.block_until_ready(
        feature_selector_forward(x, mu, sigma=sigma, training=False))
    ref_eval = feature_selector_ref(x, mu, noise, sigma, training=False)
    assert jnp.allclose(out_eval, ref_eval, atol=1e-6, rtol=1e-6)

    # Ragged, larger shape: exercises edge-tile masking (no wrapper pad/slice on x).
    B2, D2 = 300, 200
    x2 = jax.random.normal(kx, (B2, D2), dtype=jnp.float32)
    mu2 = 0.1 * jax.random.normal(kn, (D2,), dtype=jnp.float32)
    noise2 = jax.random.normal(jax.random.PRNGKey(1), (D2,), dtype=jnp.float32)
    out2 = jax.block_until_ready(
        feature_selector_forward(x2, mu2, noise2, sigma=sigma, training=True))
    ref2 = feature_selector_ref(x2, mu2, noise2, sigma, training=True)
    assert jnp.allclose(out2, ref2, atol=1e-6, rtol=1e-6)

    print("KERNEL_OK")
</pallas_src>

<mosaic_0001>
module attributes {stable_mosaic.version = 11 : i64} {
  func.func @_fs_kernel(%arg0: i32, %arg1: i32, %arg2: memref<8x32xf32, #tpu.memory_space<vmem>>, %arg3: memref<1x32xf32, #tpu.memory_space<vmem>>, %arg4: memref<8x32xf32, #tpu.memory_space<vmem>>) attributes {dimension_semantics = [#tpu.dimension_semantics<parallel>, #tpu.dimension_semantics<parallel>], iteration_bounds = array<i64: 1, 1>, scalar_prefetch = 0 : i64, scratch_operands = 0 : i64, tpu.core_type = #tpu.core_type<tc>, window_params = [{transform_indices = @transform_0, window_bounds = array<i64: 8, 32>}, {transform_indices = @transform_1, window_bounds = array<i64: 1, 32>}, {transform_indices = @transform_2, window_bounds = array<i64: 8, 32>}]} {
    %c0 = arith.constant 0 : index
    %c0_0 = arith.constant 0 : index
    %0 = vector.load %arg3[%c0, %c0_0] : memref<1x32xf32, #tpu.memory_space<vmem>>, vector<1x32xf32>
    %cst = arith.constant 5.000000e-01 : f32
    %1 = vector.broadcast %cst : f32 to vector<1x32xf32>
    %2 = arith.addf %0, %1 : vector<1x32xf32>
    %cst_1 = arith.constant 0.000000e+00 : f32
    %cst_2 = arith.constant 1.000000e+00 : f32
    %3 = vector.broadcast %cst_1 : f32 to vector<1x32xf32>
    %4 = arith.maximumf %3, %2 : vector<1x32xf32>
    %5 = vector.broadcast %cst_2 : f32 to vector<1x32xf32>
    %6 = arith.minimumf %5, %4 : vector<1x32xf32>
    %c0_3 = arith.constant 0 : index
    %c0_4 = arith.constant 0 : index
    %7 = vector.load %arg2[%c0_3, %c0_4] : memref<8x32xf32, #tpu.memory_space<vmem>>, vector<8x32xf32>
    %8 = vector.broadcast %6 : vector<1x32xf32> to vector<8x32xf32>
    %9 = arith.mulf %7, %8 : vector<8x32xf32>
    %c0_5 = arith.constant 0 : index
    %c0_6 = arith.constant 0 : index
    %10 = vector.load %arg4[%c0_5, %c0_6] : memref<8x32xf32, #tpu.memory_space<vmem>>, vector<8x32xf32>
    tpu.vector_store %arg4[%c0_5, %c0_6], %9 {strides = array<i32>} : memref<8x32xf32, #tpu.memory_space<vmem>>, vector<8x32xf32>,
    return
  }
  func.func @transform_0(%arg0: i32, %arg1: i32) -> (i32, i32) {
    %c0_i32 = arith.constant 0 : i32
    return %arg1, %arg0 : i32, i32
  }
  func.func @transform_1(%arg0: i32, %arg1: i32) -> (i32, i32) {
    %c0_i32 = arith.constant 0 : i32
    %c0_i32_0 = arith.constant 0 : i32
    return %c0_i32, %arg0 : i32, i32
  }
  func.func @transform_2(%arg0: i32, %arg1: i32) -> (i32, i32) {
    %c0_i32 = arith.constant 0 : i32
    return %arg1, %arg0 : i32, i32
  }
}

</mosaic_0001>

<llo_original>
// kernel: tpu_custom_call.1
$region0: #{tpu_custom_call.1}
  #allocation0 [shape = 'u32[]', space=smem, size = 0x4, offset = 0x4, fixed_abs, tag = 'smem constant byte address 0x4 - core index']
  #allocation1 [shape = 'u32[72,128]{1,0:T(1,128)}', space=vmem, size = 0x9000, scoped, tag = 'internal scratch']
  %s0 = inlined_call_operand.hbm [shape: f32[8,32], index: 0, kind: input, shape index: {}]
  %s1 = inlined_call_operand.hbm [shape: f32[1,32], index: 1, kind: input, shape index: {}]
  %s2 = inlined_call_operand.hbm [shape: f32[8,32], index: 2, kind: output, shape index: {}]
  %s3 = sld [smem:[#allocation0]]
  $region26: #{tpu_custom_call.1} parent=0
    _
  %s5 = ssub.s32 1, %s3
  %s6 = scalar_select 0, %s5, %s3
  $region1: #{tpu_custom_call.1} parent=0
    #allocation2 [shape = 'u8[4096]{0}', space=vmem, size = 0x1000, scoped, tag = 'input window, operand 0, single buffered']
    #allocation3 [shape = 's32[1]{0}', space=sflag, size = 0x4, scoped, tag = 'scoped memory for tpu_custom_call.1']
    #allocation4 [shape = 's32[1]{0}', space=sflag, size = 0x4, scoped, tag = 'scoped memory for tpu_custom_call.1']
    #allocation5 [shape = 'u8[512]{0}', space=vmem, size = 0x400, scoped, tag = 'input window, operand 1, single buffered']
    #allocation6 [shape = 's32[1]{0}', space=sflag, size = 0x4, scoped, tag = 'scoped memory for tpu_custom_call.1']
    #allocation7 [shape = 'u8[4096]{0}', space=vmem, size = 0x1000, scoped, tag = 'output window, operand 0, single buffered']
    %7 = vsyncpa [#allocation3], 0
    %8 = vsyncpa [#allocation6], 0
    %9 = vsyncpa [#allocation4], 0
    // Predicated region
    $region2: #{tpu_custom_call.1} parent=1 // pred_check
      _
    $region3: #{tpu_custom_call.1} parent=1 // pred_check_branch
      %11 = sbr.rel (0) target = $region5
    $region4: #{tpu_custom_call.1} parent=1 // pred_region
      %13 = vsyncadd [#allocation3], 0
      %s15 = sshll.u32 %s0, 4
      %s16 = int_to_ptr.hbm [resolvable:$true] %s15
      %s17 = sshll.u32 [#allocation2], 4
      %s18 = int_to_ptr.vmem [resolvable:$true] %s17
      %20 = dma.hbm_to_vmem [thread:$0]  %s16, 128, %s18, [#allocation3]
    $region5: #{tpu_custom_call.1} parent=1 // pred_fallthru
      _
    // Predicated region
    $region6: #{tpu_custom_call.1} parent=1 // pred_check
      _
    $region7: #{tpu_custom_call.1} parent=1 // pred_check_branch
      %22 = sbr.rel (0) target = $region9
    $region8: #{tpu_custom_call.1} parent=1 // pred_region
      %24 = vsyncadd [#allocation6], 0
      %s26 = sshll.u32 %s1, 4
      %s27 = int_to_ptr.hbm [resolvable:$true] %s26
      %s28 = sshll.u32 [#allocation5], 4
      %s29 = int_to_ptr.vmem [resolvable:$true] %s28
      %31 = dma.hbm_to_vmem [thread:$0]  %s27, 16, %s29, [#allocation6]
    $region9: #{tpu_custom_call.1} parent=1 // pred_fallthru
      _
    // Predicated region
    $region10: #{tpu_custom_call.1} parent=1 // pred_check
      _
    $region11: #{tpu_custom_call.1} parent=1 // pred_check_branch
      %33 = sbr.rel (0) target = $region13
    $region12: #{tpu_custom_call.1} parent=1 // pred_region
      %35 = dma.done [#allocation3], 128
    $region13: #{tpu_custom_call.1} parent=1 // pred_fallthru
      _
    // Predicated region
    $region14: #{tpu_custom_call.1} parent=1 // pred_check
      _
    $region15: #{tpu_custom_call.1} parent=1 // pred_check_branch
      %37 = sbr.rel (0) target = $region17
    $region16: #{tpu_custom_call.1} parent=1 // pred_region
      %39 = dma.done [#allocation6], 16
    $region17: #{tpu_custom_call.1} parent=1 // pred_fallthru
      _
    %v40 = vld [vmem:[#allocation5] sm:$0x1]
    %v41 = vadd.f32 %v40, 0.5
    %v42 = vmax.f32 %v41, 0.0
    %v43 = vmin.f32 %v42, 1.0
    %v44 = vld [vmem:[#allocation2] sm:$0xff]
    %v46 = vperm.slane %v43, 0
    %v48 = vmul.f32 %v44, %v46
    %vm49 = vcmask 261120
    %50 = vst.msk [vmem:[#allocation7] sm:$0xff] %vm49, %v48
    // Predicated region
    $region18: #{tpu_custom_call.1} parent=1 // pred_check
      _
    $region19: #{tpu_custom_call.1} parent=1 // pred_check_branch
      %52 = sbr.rel (0) target = $region21
    $region20: #{tpu_custom_call.1} parent=1 // pred_region
      %54 = vsyncadd [#allocation4], 0
      %s56 = sshll.u32 [#allocation7], 4
      %s57 = int_to_ptr.vmem [resolvable:$true] %s56
      %s58 = sshll.u32 %s2, 4
      %s59 = int_to_ptr.hbm [resolvable:$true] %s58
      %61 = dma.vmem_to_hbm [thread:$0]  %s57, 128, %s59, [#allocation4]
    $region21: #{tpu_custom_call.1} parent=1 // pred_fallthru
      _
    // Predicated region
    $region22: #{tpu_custom_call.1} parent=1 // pred_check
      _
    $region23: #{tpu_custom_call.1} parent=1 // pred_check_branch
      %63 = sbr.rel (0) target = $region25
    $region24: #{tpu_custom_call.1} parent=1 // pred_region
      %65 = dma.done [#allocation4], 128
    $region25: #{tpu_custom_call.1} parent=1 // pred_fallthru
      _
    %66 = vsyncpa [#allocation3], 1
    %67 = vsyncpa [#allocation6], 1
    %68 = vsyncpa [#allocation4], 1

</llo_original>
